<compile_context>
chip_gen: v5e
topology: v5e:2x2
jax: 0.10.0
libtpu: 0.0.40
codegen_flags: <defaults>
</compile_context>

<pallas_src>
import jax
import jax.numpy as jnp
from jax import lax
from jax.experimental import pallas as pl
from jax.experimental.pallas import tpu as pltpu


def _round_up(a, b):
    return ((a + b - 1) // b) * b


def _epilogue(acc_f32, scale, shift, out_dtype):
    # acc_f32: (tm, tn) f32;  scale/shift: (1, tn) f32 broadcast over rows.
    y = acc_f32 * scale + shift
    return jnp.where(y >= 0.0, y, 0.1 * y).astype(out_dtype)


def _kernel_single_k(x_ref, w_ref, scale_ref, shift_ref, o_ref):
    # x: (tm, tk), w: (tn, tk) in native (out, in) layout -> contract dim 1 of both.
    acc = lax.dot_general(
        x_ref[...], w_ref[...],
        dimension_numbers=(((1,), (1,)), ((), ())),
        preferred_element_type=jnp.float32)
    o_ref[...] = _epilogue(acc, scale_ref[...], shift_ref[...], o_ref.dtype)


def _kernel_multi_k(x_ref, w_ref, scale_ref, shift_ref, o_ref, acc_ref):
    k = pl.program_id(2)

    @pl.when(k == 0)
    def _():
        acc_ref[...] = jnp.zeros_like(acc_ref)

    acc_ref[...] += lax.dot_general(
        x_ref[...], w_ref[...],
        dimension_numbers=(((1,), (1,)), ((), ())),
        preferred_element_type=jnp.float32)

    @pl.when(k == pl.num_programs(2) - 1)
    def _():
        o_ref[...] = _epilogue(acc_ref[...], scale_ref[...], shift_ref[...], o_ref.dtype)


def _choose_tiles(B, in_features, out_features, block_m, block_n, block_k):
    tm = min(block_m, _round_up(B, 16))           # multiple of 16 -> valid for f32 and bf16
    # Prefer N/K tiles that are multiples of 256 (v6e/v7x MXU is 2x 256x256; v5e indifferent).
    gran_n = 256 if out_features >= 256 else 128
    gran_k = 256 if in_features >= 256 else 128
    tn = min(block_n, _round_up(out_features, gran_n))
    tk = min(block_k, _round_up(in_features, gran_k))

    # v7x has 2 TensorCores sharded over the "parallel" grid axes: if there would be only a
    # single (M, N) tile but N can still be split (staying >= 256 wide), halve tn.
    Mp = _round_up(B, tm)
    Np = _round_up(out_features, tn)
    while (Mp // tm) * (Np // tn) < 2 and tn >= 512:
        tn //= 2
        Np = _round_up(out_features, tn)
    return tm, tn, tk


def linear_layer_forward(x, weight, bias, gamma, beta, running_mean, running_var,
                         *, eps=1e-5, block_m=512, block_n=512, block_k=1024,
                         compute_dtype=jnp.bfloat16):
    """Fused Linear + BatchNorm1d(eval) + Dropout(eval=identity) + LeakyReLU(0.1).

    x:      (B, in_features)
    weight: (out_features, in_features)   (native PyTorch nn.Linear layout, consumed as-is)
    Returns (B, out_features) in x.dtype.
    """
    B, in_features = x.shape
    out_features, in_w = weight.shape
    assert in_w == in_features
    out_dtype = x.dtype

    # ---- Eval-mode BN + linear bias -> per-output-channel scale & shift (applied in epilogue).
    f32 = jnp.float32
    inv_std = lax.rsqrt(running_var.astype(f32) + jnp.asarray(eps, f32))
    scale = gamma.astype(f32) * inv_std                                              # (out,)
    shift = beta.astype(f32) + (bias.astype(f32) - running_mean.astype(f32)) * scale  # (out,)

    # ---- Tiling.
    tm, tn, tk = _choose_tiles(B, in_features, out_features, block_m, block_n, block_k)
    Mp = _round_up(B, tm)
    Np = _round_up(out_features, tn)
    Kp = _round_up(in_features, tk)
    gm, gn, gk = Mp // tm, Np // tn, Kp // tk

    # ---- Pad operands (zero K-padding is exact; padded M rows / N cols are sliced off).
    x_p = jnp.pad(x.astype(compute_dtype), ((0, Mp - B), (0, Kp - in_features)))
    w_p = jnp.pad(weight.astype(compute_dtype),
                  ((0, Np - out_features), (0, Kp - in_features)))      # (Np, Kp), native layout
    scale_p = jnp.pad(scale, ((0, Np - out_features),)).reshape(1, Np)
    shift_p = jnp.pad(shift, ((0, Np - out_features),)).reshape(1, Np)

    in_isz = jnp.dtype(compute_dtype).itemsize
    out_isz = jnp.dtype(out_dtype).itemsize
    cost = pl.CostEstimate(
        flops=2 * Mp * Np * Kp,
        transcendentals=0,
        # Actual streamed traffic: x is read once per N tile, W once per M tile.
        bytes_accessed=(Mp * Kp * in_isz) * gn + (Np * Kp * in_isz) * gm
                       + 2 * Np * 4 * gm + Mp * Np * out_isz,
    )

    def vmem_estimate(w_bufs):
        return (2 * tm * tk * in_isz                 # x tiles (double-buffered)
                + w_bufs * tn * tk * in_isz          # weight tiles
                + 4 * 2 * tn * 4                     # scale/shift tiles
                + (tm * tn * 4 if gk > 1 else 0)     # f32 accumulator scratch
                + 2 * tm * tn * out_isz)             # output tiles

    def build_and_call(w_bufs):
        w_kwargs = {}
        if w_bufs is not None and w_bufs != 2:
            w_kwargs["pipeline_mode"] = pl.Buffered(w_bufs)

        if gk == 1:
            grid = (gm, gn)
            in_specs = [
                pl.BlockSpec((tm, tk), lambda i, j: (i, 0)),                 # x tile
                pl.BlockSpec((tn, tk), lambda i, j: (j, 0), **w_kwargs),     # weight tile
                pl.BlockSpec((1, tn), lambda i, j: (0, j)),                  # BN scale
                pl.BlockSpec((1, tn), lambda i, j: (0, j)),                  # BN/bias shift
            ]
            out_spec = pl.BlockSpec((tm, tn), lambda i, j: (i, j))
            scratch = []
            kernel = _kernel_single_k
            dims = ("parallel", "parallel")
        else:
            grid = (gm, gn, gk)
            in_specs = [
                pl.BlockSpec((tm, tk), lambda i, j, k: (i, k)),
                pl.BlockSpec((tn, tk), lambda i, j, k: (j, k), **w_kwargs),
                pl.BlockSpec((1, tn), lambda i, j, k: (0, j)),
                pl.BlockSpec((1, tn), lambda i, j, k: (0, j)),
            ]
            out_spec = pl.BlockSpec((tm, tn), lambda i, j, k: (i, j))
            scratch = [pltpu.VMEM((tm, tn), jnp.float32)]
            kernel = _kernel_multi_k
            dims = ("parallel", "parallel", "arbitrary")

        vmem_limit = int(min(max(32 << 20, vmem_estimate(w_bufs or 2) * 5 // 4), 48 << 20))
        return pl.pallas_call(
            kernel,
            out_shape=jax.ShapeDtypeStruct((Mp, Np), out_dtype),
            grid_spec=pltpu.PrefetchScalarGridSpec(
                num_scalar_prefetch=0,
                grid=grid,
                in_specs=in_specs,
                out_specs=out_spec,
                scratch_shapes=scratch,
            ),
            compiler_params=pltpu.CompilerParams(
                dimension_semantics=dims,
                vmem_limit_bytes=vmem_limit,
            ),
            cost_estimate=cost,
        )(x_p, w_p, scale_p, shift_p)

    # Small-batch inference is weight-bandwidth bound: deepen the weight pipeline when the
    # per-step matmul is short and there are enough steps to benefit.
    deep_weight = (tm <= 128) and (gm * gn * gk >= 3)
    if deep_weight:
        try:
            out_padded = build_and_call(3)
        except Exception:  # fall back to default double-buffering if Buffered(3) is rejected
            out_padded = build_and_call(None)
    else:
        out_padded = build_and_call(None)

    return out_padded[:B, :out_features]


# ----------------------------- reference & tests -------------------------------------------

def _reference(x, weight, bias, gamma, beta, running_mean, running_var, eps=1e-5):
    y = x @ weight.T + bias
    y = (y - running_mean) / jnp.sqrt(running_var + eps) * gamma + beta
    return jnp.where(y >= 0.0, y, 0.1 * y)


def _make_params(key, in_features, out_features):
    kw, kb, kg, kbe, km, kv = jax.random.split(key, 6)
    weight = jax.random.normal(kw, (out_features, in_features), dtype=jnp.float32) * 0.1
    bias = jax.random.normal(kb, (out_features,), dtype=jnp.float32) * 0.1
    gamma = 1.0 + 0.1 * jax.random.normal(kg, (out_features,), dtype=jnp.float32)
    beta = 0.1 * jax.random.normal(kbe, (out_features,), dtype=jnp.float32)
    running_mean = 0.1 * jax.random.normal(km, (out_features,), dtype=jnp.float32)
    running_var = jnp.abs(jax.random.normal(kv, (out_features,), dtype=jnp.float32)) + 0.5
    return weight, bias, gamma, beta, running_mean, running_var


if __name__ == "__main__":
    root = jax.random.PRNGKey(0)
    k1, k2, k3, k4, k5, k6 = jax.random.split(root, 6)

    # --- Test 1: small module-sized layer (B=8, in=32, out=128), f32 operands, tight check.
    #     Exercises the single-K specialized kernel (no scratch accumulator).
    B, fin, fout = 8, 32, 128
    x = jax.random.normal(k1, (B, fin), dtype=jnp.float32)
    params = _make_params(k2, fin, fout)
    out = jax.block_until_ready(linear_layer_forward(x, *params, compute_dtype=jnp.float32))
    ref = _reference(x, *params)
    assert out.shape == (B, fout)
    assert jnp.allclose(out, ref, atol=1e-5, rtol=1e-5), float(jnp.max(jnp.abs(out - ref)))

    # --- Test 2: multi-tile M/N/K grid (accumulator + pl.when init/finalize) with a
    #     non-divisible batch, f32 operands, tight check.  Also exercises Buffered(3).
    B2, fin2, fout2 = 50, 384, 256
    x2 = jax.random.normal(k3, (B2, fin2), dtype=jnp.float32)
    params2 = _make_params(k4, fin2, fout2)
    out2 = jax.block_until_ready(
        linear_layer_forward(x2, *params2, compute_dtype=jnp.float32,
                             block_m=16, block_n=128, block_k=128))
    ref2 = _reference(x2, *params2)
    assert out2.shape == (B2, fout2)
    assert jnp.allclose(out2, ref2, atol=1e-4, rtol=1e-4), float(jnp.max(jnp.abs(out2 - ref2)))

    # --- Test 3: default fast path (bf16 MXU operands, big tiles, N-tile split so both v7x
    #     TensorCores get work), loose sanity check.
    B3, fin3, fout3 = 64, 384, 512
    x3 = jax.random.normal(k5, (B3, fin3), dtype=jnp.float32)
    params3 = _make_params(k6, fin3, fout3)
    out3 = jax.block_until_ready(linear_layer_forward(x3, *params3))
    ref3 = _reference(x3, *params3)
    assert out3.shape == (B3, fout3)
    assert float(jnp.max(jnp.abs(out3 - ref3))) < 0.5

    print("KERNEL_OK")
</pallas_src>

<mosaic_0001>
module attributes {stable_mosaic.version = 11 : i64} {
  func.func @_kernel_single_k(%arg0: i32, %arg1: i32, %arg2: memref<16x128xf32, #tpu.memory_space<vmem>>, %arg3: memref<128x128xf32, #tpu.memory_space<vmem>>, %arg4: memref<1x128xf32, #tpu.memory_space<vmem>>, %arg5: memref<1x128xf32, #tpu.memory_space<vmem>>, %arg6: memref<16x128xf32, #tpu.memory_space<vmem>>) attributes {dimension_semantics = [#tpu.dimension_semantics<parallel>, #tpu.dimension_semantics<parallel>], iteration_bounds = array<i64: 1, 1>, scalar_prefetch = 0 : i64, scratch_operands = 0 : i64, tpu.core_type = #tpu.core_type<tc>, window_params = [{transform_indices = @transform_0, window_bounds = array<i64: 16, 128>}, {transform_indices = @transform_1, window_bounds = array<i64: 128, 128>}, {transform_indices = @transform_2, window_bounds = array<i64: 1, 128>}, {transform_indices = @transform_3, window_bounds = array<i64: 1, 128>}, {transform_indices = @transform_4, window_bounds = array<i64: 16, 128>}]} {
    %c0 = arith.constant 0 : index
    %c0_0 = arith.constant 0 : index
    %0 = vector.load %arg2[%c0, %c0_0] : memref<16x128xf32, #tpu.memory_space<vmem>>, vector<16x128xf32>
    %c0_1 = arith.constant 0 : index
    %c0_2 = arith.constant 0 : index
    %1 = vector.load %arg3[%c0_1, %c0_2] : memref<128x128xf32, #tpu.memory_space<vmem>>, vector<128x128xf32>
    %cst = arith.constant dense<0.000000e+00> : vector<16x128xf32>
    %2 = tpu.matmul %0, %1, %cst {dimension_numbers = #tpu.dot_dimension_numbers<[1], [1], [0], [0], [0, 0, 1, 0], [], []>} : vector<16x128xf32>, vector<128x128xf32>, vector<16x128xf32> -> vector<16x128xf32>
    %c0_3 = arith.constant 0 : index
    %c0_4 = arith.constant 0 : index
    %3 = vector.load %arg4[%c0_3, %c0_4] : memref<1x128xf32, #tpu.memory_space<vmem>>, vector<1x128xf32>
    %c0_5 = arith.constant 0 : index
    %c0_6 = arith.constant 0 : index
    %4 = vector.load %arg5[%c0_5, %c0_6] : memref<1x128xf32, #tpu.memory_space<vmem>>, vector<1x128xf32>
    %5 = vector.broadcast %3 : vector<1x128xf32> to vector<16x128xf32>
    %6 = arith.mulf %2, %5 : vector<16x128xf32>
    %7 = vector.broadcast %4 : vector<1x128xf32> to vector<16x128xf32>
    %8 = arith.addf %6, %7 : vector<16x128xf32>
    %cst_7 = arith.constant 0.000000e+00 : f32
    %9 = vector.broadcast %cst_7 : f32 to vector<16x128xf32>
    %10 = arith.cmpf oge, %8, %9 : vector<16x128xf32>
    %cst_8 = arith.constant 1.000000e-01 : f32
    %11 = vector.broadcast %cst_8 : f32 to vector<16x128xf32>
    %12 = arith.mulf %11, %8 : vector<16x128xf32>
    %13 = arith.select %10, %8, %12 : vector<16x128xi1>, vector<16x128xf32>
    %c0_9 = arith.constant 0 : index
    %c0_10 = arith.constant 0 : index
    %14 = vector.load %arg6[%c0_9, %c0_10] : memref<16x128xf32, #tpu.memory_space<vmem>>, vector<16x128xf32>
    tpu.vector_store %arg6[%c0_9, %c0_10], %13 {strides = array<i32>} : memref<16x128xf32, #tpu.memory_space<vmem>>, vector<16x128xf32>,
    return
  }
  func.func @transform_0(%arg0: i32, %arg1: i32) -> (i32, i32) {
    %c0_i32 = arith.constant 0 : i32
    %c0_i32_0 = arith.constant 0 : i32
    return %arg0, %c0_i32 : i32, i32
  }
  func.func @transform_1(%arg0: i32, %arg1: i32) -> (i32, i32) {
    %c0_i32 = arith.constant 0 : i32
    %c0_i32_0 = arith.constant 0 : i32
    return %arg1, %c0_i32 : i32, i32
  }
  func.func @transform_2(%arg0: i32, %arg1: i32) -> (i32, i32) {
    %c0_i32 = arith.constant 0 : i32
    %c0_i32_0 = arith.constant 0 : i32
    return %c0_i32, %arg1 : i32, i32
  }
  func.func @transform_3(%arg0: i32, %arg1: i32) -> (i32, i32) {
    %c0_i32 = arith.constant 0 : i32
    %c0_i32_0 = arith.constant 0 : i32
    return %c0_i32, %arg1 : i32, i32
  }
  func.func @transform_4(%arg0: i32, %arg1: i32) -> (i32, i32) {
    %c0_i32 = arith.constant 0 : i32
    return %arg0, %arg1 : i32, i32
  }
}

</mosaic_0001>

<llo_original>
// kernel: tpu_custom_call.1
$region0: #{tpu_custom_call.1}
  #allocation0 [shape = 'u32[]', space=smem, size = 0x4, offset = 0x4, fixed_abs, tag = 'smem constant byte address 0x4 - core index']
  #allocation1 [shape = 'u32[72,128]{1,0:T(1,128)}', space=vmem, size = 0x9000, scoped, tag = 'internal scratch']
  %s0 = inlined_call_operand.hbm [shape: f32[16,128], index: 0, kind: input, shape index: {}]
  %s1 = inlined_call_operand.hbm [shape: f32[128,128], index: 1, kind: input, shape index: {}]
  %s2 = inlined_call_operand.vmem [shape: f32[1,128], index: 2, kind: input, shape index: {}]
  %s3 = inlined_call_operand.vmem [shape: f32[1,128], index: 3, kind: input, shape index: {}]
  %s4 = inlined_call_operand.hbm [shape: f32[16,128], index: 4, kind: output, shape index: {}]
  %s5 = sld [smem:[#allocation0]]
  $region34: #{tpu_custom_call.1} parent=0
    _
  %s7 = ssub.s32 1, %s5
  %s8 = scalar_select 0, %s7, %s5
  $region1: #{tpu_custom_call.1} parent=0
    #allocation2 [shape = 'u8[8192]{0}', space=vmem, size = 0x2000, scoped, tag = 'input window, operand 0, single buffered']
    #allocation3 [shape = 's32[1]{0}', space=sflag, size = 0x4, scoped, tag = 'scoped memory for tpu_custom_call.1']
    #allocation4 [shape = 's32[1]{0}', space=sflag, size = 0x4, scoped, tag = 'scoped memory for tpu_custom_call.1']
    #allocation5 [shape = 'u8[65536]{0}', space=vmem, size = 0x10000, scoped, tag = 'input window, operand 1, single buffered']
    #allocation6 [shape = 's32[1]{0}', space=sflag, size = 0x4, scoped, tag = 'scoped memory for tpu_custom_call.1']
    #allocation7 [shape = 'u8[8192]{0}', space=vmem, size = 0x2000, scoped, tag = 'output window, operand 0, single buffered']
    %9 = vsyncpa [#allocation3], 0
    %10 = vsyncpa [#allocation6], 0
    %11 = vsyncpa [#allocation4], 0
    // Predicated region
    $region2: #{tpu_custom_call.1} parent=1 // pred_check
      _
    $region3: #{tpu_custom_call.1} parent=1 // pred_check_branch
      %13 = sbr.rel (0) target = $region5
    $region4: #{tpu_custom_call.1} parent=1 // pred_region
      %15 = vsyncadd [#allocation3], 0
      %s16 = sshll.u32 %s0, 4
      %s17 = int_to_ptr.hbm [resolvable:$true] %s16
      %s18 = sshll.u32 [#allocation2], 4
      %s19 = int_to_ptr.vmem [resolvable:$true] %s18
      %24 = dma.hbm_to_vmem [thread:$0]  %s17, 256, %s19, [#allocation3], 128, 128, 8
    $region5: #{tpu_custom_call.1} parent=1 // pred_fallthru
      _
    // Predicated region
    $region6: #{tpu_custom_call.1} parent=1 // pred_check
      _
    $region7: #{tpu_custom_call.1} parent=1 // pred_check_branch
      %26 = sbr.rel (0) target = $region9
    $region8: #{tpu_custom_call.1} parent=1 // pred_region
      %28 = vsyncadd [#allocation6], 0
      %s29 = sshll.u32 %s1, 4
      %s30 = int_to_ptr.hbm [resolvable:$true] %s29
      %s31 = sshll.u32 [#allocation5], 4
      %s32 = int_to_ptr.vmem [resolvable:$true] %s31
      %37 = dma.hbm_to_vmem [thread:$0]  %s30, 2048, %s32, [#allocation6], 128, 128, 8
    $region9: #{tpu_custom_call.1} parent=1 // pred_fallthru
      _
    // Predicated region
    $region10: #{tpu_custom_call.1} parent=1 // pred_check
      _
    $region11: #{tpu_custom_call.1} parent=1 // pred_check_branch
      %39 = sbr.rel (0) target = $region13
    $region12: #{tpu_custom_call.1} parent=1 // pred_region
      _
    $region13: #{tpu_custom_call.1} parent=1 // pred_fallthru
      _
    // Predicated region
    $region14: #{tpu_custom_call.1} parent=1 // pred_check
      _
    $region15: #{tpu_custom_call.1} parent=1 // pred_check_branch
      %41 = sbr.rel (0) target = $region17
    $region16: #{tpu_custom_call.1} parent=1 // pred_region
      _
    $region17: #{tpu_custom_call.1} parent=1 // pred_fallthru
      _
    // Predicated region
    $region18: #{tpu_custom_call.1} parent=1 // pred_check
      _
    $region19: #{tpu_custom_call.1} parent=1 // pred_check_branch
      %43 = sbr.rel (0) target = $region21
    $region20: #{tpu_custom_call.1} parent=1 // pred_region
      %45 = dma.done [#allocation3], 256
    $region21: #{tpu_custom_call.1} parent=1 // pred_fallthru
      _
    // Predicated region
    $region22: #{tpu_custom_call.1} parent=1 // pred_check
      _
    $region23: #{tpu_custom_call.1} parent=1 // pred_check_branch
      %47 = sbr.rel (0) target = $region25
    $region24: #{tpu_custom_call.1} parent=1 // pred_region
      %49 = dma.done [#allocation6], 2048
    $region25: #{tpu_custom_call.1} parent=1 // pred_fallthru
      _
    %v50 = vld [vmem:[#allocation2] sm:$0xff]
    %v51 = vld [vmem:[#allocation2 + $0x8] sm:$0xff]
    %v52 = vld [vmem:[#allocation5] sm:$0xff]
    %v53 = vld [vmem:[#allocation5 + $0x8] sm:$0xff]
    %v54 = vld [vmem:[#allocation5 + $0x10] sm:$0xff]
    %v55 = vld [vmem:[#allocation5 + $0x18] sm:$0xff]
    %v56 = vld [vmem:[#allocation5 + $0x20] sm:$0xff]
    %v57 = vld [vmem:[#allocation5 + $0x28] sm:$0xff]
    %v58 = vld [vmem:[#allocation5 + $0x30] sm:$0xff]
    %v59 = vld [vmem:[#allocation5 + $0x38] sm:$0xff]
    %v60 = vld [vmem:[#allocation5 + $0x40] sm:$0xff]
    %v61 = vld [vmem:[#allocation5 + $0x48] sm:$0xff]
    %v62 = vld [vmem:[#allocation5 + $0x50] sm:$0xff]
    %v63 = vld [vmem:[#allocation5 + $0x58] sm:$0xff]
    %v64 = vld [vmem:[#allocation5 + $0x60] sm:$0xff]
    %v65 = vld [vmem:[#allocation5 + $0x68] sm:$0xff]
    %v66 = vld [vmem:[#allocation5 + $0x70] sm:$0xff]
    %v67 = vld [vmem:[#allocation5 + $0x78] sm:$0xff]
    %68 = vmatpush.xpose.msra.mxu0 %v67
    %69 = vmatpush.xpose.msra.mxu0 %v66
    %70 = vmatpush.xpose.msra.mxu0 %v65
    %71 = vmatpush.xpose.msra.mxu0 %v64
    %72 = vmatpush.xpose.msra.mxu0 %v63
    %73 = vmatpush.xpose.msra.mxu0 %v62
    %74 = vmatpush.xpose.msra.mxu0 %v61
    %75 = vmatpush.xpose.msra.mxu0 %v60
    %76 = vmatpush.xpose.msra.mxu0 %v59
    %77 = vmatpush.xpose.msra.mxu0 %v58
    %78 = vmatpush.xpose.msra.mxu0 %v57
    %79 = vmatpush.xpose.msra.mxu0 %v56
    %80 = vmatpush.xpose.msra.mxu0 %v55
    %81 = vmatpush.xpose.msra.mxu0 %v54
    %82 = vmatpush.xpose.msra.mxu0 %v53
    %83 = vmatpush.xpose.msra.mxu0 %v52
    %84 = vmatmul.f32.gmra.mxu0 %v50
    %v85 = vpop.f32.mrf.mxu0
    %v86 = vadd.f32 0.0, %v85
    %87 = vmatmul.f32.gmra.mxu0 %v51
    %v88 = vpop.f32.mrf.mxu0
    %v89 = vadd.f32 0.0, %v88
    %90 = vdwg.mxu0
    %v91 = vld [vmem:[%s2] sm:$0x1]
    %v92 = vld [vmem:[%s3] sm:$0x1]
    %v94 = vperm.slane %v91, 0
    %v96 = vmul.f32 %v86, %v94
    %v97 = vmul.f32 %v89, %v94
    %v99 = vperm.slane %v92, 0
    %v101 = vadd.f32 %v96, %v99
    %v102 = vadd.f32 %v97, %v99
    %vm103 = vcmp.ge.f32.partialorder %v101, 0.0
    %vm104 = vcmp.ge.f32.partialorder %v102, 0.0
    %v105 = vmul.f32 %v101, 0.1
    %v106 = vmul.f32 %v102, 0.1
    %v107 = vsel %vm103, %v101, %v105
    %v108 = vsel %vm104, %v102, %v106
    %109 = vst [vmem:[#allocation7] sm:$0xff] %v107
    %110 = vst [vmem:[#allocation7 + $0x8] sm:$0xff] %v108
    // Predicated region
    $region26: #{tpu_custom_call.1} parent=1 // pred_check
      _
    $region27: #{tpu_custom_call.1} parent=1 // pred_check_branch
      %112 = sbr.rel (0) target = $region29
    $region28: #{tpu_custom_call.1} parent=1 // pred_region
      %114 = vsyncadd [#allocation4], 0
      %s115 = sshll.u32 [#allocation7], 4
      %s116 = int_to_ptr.vmem [resolvable:$true] %s115
      %s117 = sshll.u32 %s4, 4
      %s118 = int_to_ptr.hbm [resolvable:$true] %s117
      %123 = dma.vmem_to_hbm [thread:$0]  %s116, 256, %s118, [#allocation4], 128, 128, 8
    $region29: #{tpu_custom_call.1} parent=1 // pred_fallthru
      _
    // Predicated region
    $region30: #{tpu_custom_call.1} parent=1 // pred_check
      _
    $region31: #{tpu_custom_call.1} parent=1 // pred_check_branch
      %125 = sbr.rel (0) target = $region33
    $region32: #{tpu_custom_call.1} parent=1 // pred_region
      %127 = dma.done [#allocation4], 256
    $region33: #{tpu_custom_call.1} parent=1 // pred_fallthru
      _
    %128 = vsyncpa [#allocation3], 1
    %129 = vsyncpa [#allocation6], 1
    %130 = vsyncpa [#allocation4], 1

</llo_original>
